<compile_context>
chip_gen: v5e
topology: v5e:2x2
jax: 0.10.0
libtpu: 0.0.40
codegen_flags: <defaults>
</compile_context>

<pallas_src>
import functools

import jax
import jax.numpy as jnp
from jax.experimental import pallas as pl
from jax.experimental.pallas import tpu as pltpu

# ---------------- configuration (DTPConfig stand-in) ----------------
D_INPUT = 512        # CLIP feature dim (feature-extractor output / clip_to_image in)
D_MODEL = 64         # selector d_model
VISUAL_HIDDEN = 32   # visual_hidden_size
THRESHOLD = 0.9


# ---------------- fused DTP forward kernel (grid over the T frames of the window) ----------------
def _dtp_kernel(frame_ref, w_sel_ref, b_sel_ref, w_c2i_ref, b_c2i_ref,   # inputs
                flag_ref, img_ref,                                        # outputs
                prev_ref, prev_sq_ref, cos_acc_ref,                       # scratch: carried frame state
                best_logit_ref, best_pooled_ref,                          # scratch: streaming argmax
                *, threshold, num_frames):
    i = pl.program_id(0)

    # One frame tile per step, upcast per-tile (bf16 in HBM -> f32 VPU math; v5e-safe).
    cur = frame_ref[...].astype(jnp.float32)                 # (B, N, C)
    sq_cur = jnp.sum(cur * cur, axis=-1)                     # (B, N) token squared norms, once per frame
    pooled = jnp.mean(cur, axis=1)                           # (B, C) token mean-pool
    # Folded selector head (w_fe @ w_emb @ w_log): lane-dense VPU multiply + reduce, no MXU pass.
    logit = jnp.sum(pooled * w_sel_ref[...], axis=-1, keepdims=True) + b_sel_ref[...]   # (B, 1)

    @pl.when(i == 0)
    def _init():
        cos_acc_ref[...] = jnp.zeros_like(cos_acc_ref)
        best_logit_ref[...] = logit
        best_pooled_ref[...] = pooled

    @pl.when(i > 0)
    def _accumulate():
        # ---- Discriminator: adjacent-frame cosine similarity (segment_length == T) ----
        eps = 1e-8
        dots = jnp.sum(prev_ref[...] * cur, axis=-1)                     # (B, N)
        # single rsqrt == dot / max(||a||*||b||, eps)  (one EUP push vs 2x sqrt + divide)
        cos = dots * jax.lax.rsqrt(jnp.maximum(prev_sq_ref[...] * sq_cur, eps * eps))
        cos_acc_ref[...] += cos
        # ---- Selector: streaming argmax over time (strict '>' keeps first index on ties) ----
        upd = logit > best_logit_ref[...]
        best_logit_ref[...] = jnp.where(upd, logit, best_logit_ref[...])
        best_pooled_ref[...] = jnp.where(upd, pooled, best_pooled_ref[...])

    # Carry this frame (and its squared norms) for the next adjacent pair.
    prev_ref[...] = cur
    prev_sq_ref[...] = sq_cur

    @pl.when(i == num_frames - 1)
    def _finalize():
        seg_sim = cos_acc_ref[...] * (1.0 / (num_frames - 1))            # (B, N)
        mn = jnp.min(seg_sim)                                            # global min/max (matches torch .min()/.max())
        mx = jnp.max(seg_sim)
        denom = jnp.maximum(mx - mn, 1e-12)                              # guard mx == mn (NaN in reference)
        # TODO(synk): the reference's `if Discriminator(...) == 1` on a multi-element tensor is
        # ill-defined; we keep the "any token judged similar" reading: any(normalized > thr)
        # == max(normalized) > thr == (mx - mn)/denom > thr (degenerate: true whenever mx > mn).
        gate = ((mx - mn) / denom > threshold).astype(jnp.float32)
        flag_ref[...] = gate * jnp.ones((1, 1), jnp.float32)

        # clip_to_image with w_fe folded in: (B,C) @ (C,32), f32, once per batch row.
        img = jnp.dot(best_pooled_ref[...], w_c2i_ref[...],
                      preferred_element_type=jnp.float32) + b_c2i_ref[...]
        # zero the projection when the gate fails (reference returns None there)
        img_ref[...] = (img * gate).astype(img_ref.dtype)


def _fused_call(image, folded, *, t, frames_length, threshold=THRESHOLD):
    B, T_total, NTOK, C = image.shape
    T = frames_length
    assert t + T <= T_total and T >= 2

    w_sel = folded["w_sel"]      # (1, C)  f32
    b_sel = folded["b_sel"]      # (1, 1)  f32
    w_c2i = folded["w_c2i"]      # (C, VISUAL_HIDDEN) f32
    b_c2i = folded["b_c2i"]      # (1, VISUAL_HIDDEN) f32

    # VMEM budget (per-generation safe): double-buffered frame tile + carried f32 frame +
    # small scratch/weights, with headroom; clamped below v7x's 64 MiB physical VMEM.
    # TODO(synk): at toy C=32 only 32/128 lanes are live; production C=1024 is already lane-dense.
    frame_tile = B * NTOK * C * image.dtype.itemsize
    scratch = 4 * (B * NTOK * C + 2 * B * NTOK + B + B * C)
    weights = 4 * (w_sel.size + b_sel.size + w_c2i.size + b_c2i.size)
    need = 2 * frame_tile + scratch + 2 * weights + 4 * 2 * (1 + B * VISUAL_HIDDEN)
    vmem_limit = int(min(max(2 * need + (2 << 20), 8 << 20), 56 << 20))

    flops = (6 * B * T * NTOK * C          # discriminator + pooling elementwise/reductions
             + 2 * B * T * C               # folded logits head
             + 2 * B * C * VISUAL_HIDDEN)  # folded clip_to_image
    bytes_accessed = (B * T * NTOK * C * image.dtype.itemsize
                      + weights + 4 * (1 + B * VISUAL_HIDDEN))

    kern = functools.partial(_dtp_kernel, threshold=threshold, num_frames=T)
    flag, img = pl.pallas_call(
        kern,
        grid=(T,),
        in_specs=[
            # Full image in HBM; static window offset `t` folded into the index_map, one frame
            # (B, N, C) per grid step -> Pallas double-buffers the DMA behind compute.
            pl.BlockSpec((B, None, NTOK, C), lambda i: (0, t + i, 0, 0)),
            pl.BlockSpec(w_sel.shape, lambda i: (0, 0)),
            pl.BlockSpec(b_sel.shape, lambda i: (0, 0)),
            pl.BlockSpec(w_c2i.shape, lambda i: (0, 0)),
            pl.BlockSpec(b_c2i.shape, lambda i: (0, 0)),
        ],
        out_specs=(pl.BlockSpec((1, 1), lambda i: (0, 0)),
                   pl.BlockSpec((B, VISUAL_HIDDEN), lambda i: (0, 0))),
        out_shape=(jax.ShapeDtypeStruct((1, 1), jnp.float32),
                   jax.ShapeDtypeStruct((B, VISUAL_HIDDEN), jnp.float32)),
        scratch_shapes=[
            pltpu.VMEM((B, NTOK, C), jnp.float32),   # previous frame (f32, upcast once)
            pltpu.VMEM((B, NTOK), jnp.float32),      # previous frame squared norms
            pltpu.VMEM((B, NTOK), jnp.float32),      # cos-sim accumulator
            pltpu.VMEM((B, 1), jnp.float32),         # running best logit
            pltpu.VMEM((B, C), jnp.float32),         # running best pooled frame
        ],
        compiler_params=pltpu.CompilerParams(
            dimension_semantics=("arbitrary",),      # scratch carried across T
            vmem_limit_bytes=vmem_limit),
        cost_estimate=pl.CostEstimate(flops=flops,
                                      transcendentals=B * NTOK * (T - 1),
                                      bytes_accessed=bytes_accessed),
    )(image, w_sel, b_sel, w_c2i, b_c2i)
    return flag, img


# ---------------- DTP forward ----------------
@functools.partial(jax.jit, static_argnames=("t", "frames_length", "N"))
def dtp_forward(image, folded_params, t, frames_length=10, N=0):
    """DTP.forward. Returns (flag, image_embeds).

    flag is a device scalar (1.0 / 0.0) from the discriminator gate; image_embeds is
    (B, N, visual_hidden) and is zeroed when flag == 0. The single device->host read of
    flag happens once, after dispatch (no mid-pipeline sync).
    """
    B = image.shape[0]
    flag, img = _fused_call(image, folded_params, t=t, frames_length=frames_length)
    image_embeds = jnp.broadcast_to(img[:, None, :], (B, N, VISUAL_HIDDEN))
    return flag[0, 0], image_embeds


# ---------------- parameters & offline folding ----------------
def init_params(key, B, C):
    ks = jax.random.split(key, 8)
    scale = 0.02
    return {
        # f32 master weights; heads are folded offline (see fold_params).
        "w_fe": scale * jax.random.normal(ks[0], (C, D_INPUT), jnp.float32),
        "b_fe": jnp.zeros((D_INPUT,), jnp.float32),
        "w_emb": scale * jax.random.normal(ks[1], (D_INPUT, D_MODEL), jnp.float32),
        "b_emb": jnp.zeros((D_MODEL,), jnp.float32),
        "w_log": scale * jax.random.normal(ks[2], (D_MODEL, 1), jnp.float32),
        "b_log": jnp.zeros((1,), jnp.float32),
        "w_c2i": scale * jax.random.normal(ks[3], (D_INPUT, VISUAL_HIDDEN), jnp.float32),
        "b_c2i": jnp.zeros((VISUAL_HIDDEN,), jnp.float32),
        # TODO(synk): with the identity DTPEncoder stand-in the text-query row is concatenated,
        # embedded and sliced off before the logits head, so it cannot affect the eval-mode
        # output; kept for structural parity only.
        "prompt_embeds": jax.random.normal(ks[4], (B, D_INPUT), jnp.float32),
    }


def fold_params(params):
    """Offline fold of the (linear) feature-extractor stand-in into both heads.

    TODO(synk): valid only while the DTPEncoder / frozen-CLIP stand-ins are identity/linear;
    a real transformer encoder would require keeping the per-frame fe path in-kernel.
    """
    w_fe = params["w_fe"].astype(jnp.float32)          # (C, 512)
    b_fe = params["b_fe"].astype(jnp.float32)          # (512,)
    sel_head = params["w_emb"] @ params["w_log"]       # (512, 1)
    w_sel = (w_fe @ sel_head).reshape(1, -1)           # (1, C)
    b_sel = (b_fe @ sel_head + params["b_emb"] @ params["w_log"]
             + params["b_log"]).reshape(1, 1)          # (1, 1)
    w_c2i = w_fe @ params["w_c2i"]                     # (C, 32)
    b_c2i = (b_fe @ params["w_c2i"] + params["b_c2i"]).reshape(1, -1)   # (1, 32)
    return {"w_sel": w_sel, "b_sel": b_sel, "w_c2i": w_c2i, "b_c2i": b_c2i}


# ---------------- pure-JAX reference (unfolded path) ----------------
def _reference(image, params, t, frames_length, N):
    frames = image[:, t:t + frames_length].astype(jnp.float32)   # (B, T, NTOK, C)
    B = frames.shape[0]
    eps = 1e-8
    a, b = frames[:, :-1], frames[:, 1:]
    dots = jnp.sum(a * b, axis=-1)
    na = jnp.sqrt(jnp.sum(a * a, axis=-1))
    nb = jnp.sqrt(jnp.sum(b * b, axis=-1))
    cos = dots / jnp.maximum(na * nb, eps)
    seg = jnp.mean(cos, axis=1)                                   # (B, NTOK)
    mn, mx = jnp.min(seg), jnp.max(seg)
    gate = (((mx - mn) / jnp.maximum(mx - mn, 1e-12)) > THRESHOLD).astype(jnp.float32)
    pooled = jnp.mean(frames, axis=2)                             # (B, T, C)
    fe = pooled @ params["w_fe"] + params["b_fe"]                 # (B, T, 512)
    logits = (fe @ params["w_emb"] + params["b_emb"]) @ params["w_log"] + params["b_log"]
    idx = jnp.argmax(logits[..., 0], axis=1)                      # (B,)
    sel = jnp.take_along_axis(fe, idx[:, None, None], axis=1)[:, 0]   # (B, 512)
    img = (sel @ params["w_c2i"] + params["b_c2i"]) * gate        # (B, 32)
    return gate, jnp.broadcast_to(img[:, None, :], (B, N, VISUAL_HIDDEN))


if __name__ == "__main__":
    key = jax.random.PRNGKey(0)
    k_img, k_par = jax.random.split(key)

    B, T_total, NTOK, C = 2, 16, 8, 32
    frames_length = 10
    t = 3
    N_expand = 4

    # frames travel HBM->VMEM as bf16 (half the dominant DMA); math is f32 in-kernel.
    image = jax.random.normal(k_img, (B, T_total, NTOK, C), jnp.float32).astype(jnp.bfloat16)
    params = init_params(k_par, B, C)
    folded = fold_params(params)          # offline head folding, outside jit

    flag, image_embeds = dtp_forward(image, folded, t=t,
                                     frames_length=frames_length, N=N_expand)
    jax.block_until_ready(image_embeds)

    # Single, deferred device->host read reproduces the (0, None) / (1, embeds) contract.
    flag_host = int(jax.device_get(flag))
    result = (flag_host, image_embeds if flag_host == 1 else None)

    assert image_embeds.shape == (B, N_expand, VISUAL_HIDDEN)
    assert not bool(jnp.any(jnp.isnan(image_embeds)))
    if result[1] is not None:
        assert result[1].shape == (B, N_expand, VISUAL_HIDDEN)

    # Tolerance check vs. the pure-JAX unfolded reference (bf16 frames => loose tolerance).
    ref_flag, ref_embeds = _reference(image, params, t, frames_length, N_expand)
    assert abs(float(ref_flag) - float(flag_host)) < 1e-6
    assert bool(jnp.allclose(image_embeds, ref_embeds, rtol=2e-2, atol=1e-3))

    print("KERNEL_OK")
</pallas_src>

<mosaic_0001>
module attributes {stable_mosaic.version = 11 : i64} {
  func.func @_dtp_kernel(%arg0: i32, %arg1: memref<2x1x8x32xbf16, #tpu.memory_space<vmem>>, %arg2: memref<1x32xf32, #tpu.memory_space<vmem>>, %arg3: memref<1x1xf32, #tpu.memory_space<vmem>>, %arg4: memref<32x32xf32, #tpu.memory_space<vmem>>, %arg5: memref<1x32xf32, #tpu.memory_space<vmem>>, %arg6: memref<1x1xf32, #tpu.memory_space<vmem>>, %arg7: memref<2x32xf32, #tpu.memory_space<vmem>>, %arg8: memref<2x8x32xf32, #tpu.memory_space<vmem>>, %arg9: memref<2x8xf32, #tpu.memory_space<vmem>>, %arg10: memref<2x8xf32, #tpu.memory_space<vmem>>, %arg11: memref<2x1xf32, #tpu.memory_space<vmem>>, %arg12: memref<2x32xf32, #tpu.memory_space<vmem>>) attributes {dimension_semantics = [#tpu.dimension_semantics<arbitrary>], iteration_bounds = array<i64: 10>, scalar_prefetch = 0 : i64, scratch_operands = 5 : i64, tpu.core_type = #tpu.core_type<tc>, window_params = [{transform_indices = @transform_0, window_bounds = array<i64: 2, 1, 8, 32>}, {pipeline_mode = #tpu.pipeline_mode<synchronous>, transform_indices = @transform_1, window_bounds = array<i64: 1, 32>}, {pipeline_mode = #tpu.pipeline_mode<synchronous>, transform_indices = @transform_2, window_bounds = array<i64: 1, 1>}, {pipeline_mode = #tpu.pipeline_mode<synchronous>, transform_indices = @transform_3, window_bounds = array<i64: 32, 32>}, {pipeline_mode = #tpu.pipeline_mode<synchronous>, transform_indices = @transform_4, window_bounds = array<i64: 1, 32>}, {pipeline_mode = #tpu.pipeline_mode<synchronous>, transform_indices = @transform_5, window_bounds = array<i64: 1, 1>}, {pipeline_mode = #tpu.pipeline_mode<synchronous>, transform_indices = @transform_6, window_bounds = array<i64: 2, 32>}]} {
    %c0 = arith.constant 0 : index
    %c0_0 = arith.constant 0 : index
    %c0_1 = arith.constant 0 : index
    %c0_2 = arith.constant 0 : index
    %0 = vector.load %arg1[%c0, %c0_0, %c0_1, %c0_2] : memref<2x1x8x32xbf16, #tpu.memory_space<vmem>>, vector<2x1x8x32xbf16>
    %1 = vector.shape_cast %0 : vector<2x1x8x32xbf16> to vector<2x8x32xbf16>
    %2 = arith.extf %1 : vector<2x8x32xbf16> to vector<2x8x32xf32>
    %3 = arith.mulf %2, %2 : vector<2x8x32xf32>
    %cst = arith.constant dense<0.000000e+00> : vector<2x8xf32>
    %4 = vector.multi_reduction <add>, %3, %cst [2] : vector<2x8x32xf32> to vector<2x8xf32>
    %cst_3 = arith.constant dense<0.000000e+00> : vector<2x32xf32>
    %5 = vector.multi_reduction <add>, %2, %cst_3 [1] : vector<2x8x32xf32> to vector<2x32xf32>
    %cst_4 = arith.constant 8.000000e+00 : f32
    %6 = vector.broadcast %cst_4 : f32 to vector<2x32xf32>
    %7 = arith.divf %5, %6 : vector<2x32xf32>
    %c0_5 = arith.constant 0 : index
    %c0_6 = arith.constant 0 : index
    %8 = vector.load %arg2[%c0_5, %c0_6] : memref<1x32xf32, #tpu.memory_space<vmem>>, vector<1x32xf32>
    %9 = vector.broadcast %8 : vector<1x32xf32> to vector<2x32xf32>
    %10 = arith.mulf %7, %9 : vector<2x32xf32>
    %cst_7 = arith.constant dense<0.000000e+00> : vector<2xf32>
    %11 = vector.multi_reduction <add>, %10, %cst_7 [1] : vector<2x32xf32> to vector<2xf32>
    %12 = vector.shape_cast %11 : vector<2xf32> to vector<2x1xf32>
    %c0_8 = arith.constant 0 : index
    %c0_9 = arith.constant 0 : index
    %13 = vector.load %arg3[%c0_8, %c0_9] : memref<1x1xf32, #tpu.memory_space<vmem>>, vector<1x1xf32>
    %14 = vector.broadcast %13 : vector<1x1xf32> to vector<2x1xf32>
    %15 = arith.addf %12, %14 : vector<2x1xf32>
    %c0_i32 = arith.constant 0 : i32
    %16 = arith.cmpi eq, %arg0, %c0_i32 : i32
    %17 = arith.extui %16 : i1 to i32
    %c0_i32_10 = arith.constant 0 : i32
    %18 = arith.cmpi ne, %17, %c0_i32_10 : i32
    scf.if %18 {
      %cst_19 = arith.constant 0.000000e+00 : f32
      %27 = vector.broadcast %cst_19 : f32 to vector<2x8xf32>
      %c0_20 = arith.constant 0 : index
      %c0_21 = arith.constant 0 : index
      %28 = vector.load %arg10[%c0_20, %c0_21] : memref<2x8xf32, #tpu.memory_space<vmem>>, vector<2x8xf32>
      tpu.vector_store %arg10[%c0_20, %c0_21], %27 {strides = array<i32>} : memref<2x8xf32, #tpu.memory_space<vmem>>, vector<2x8xf32>,
      %c0_22 = arith.constant 0 : index
      %c0_23 = arith.constant 0 : index
      %29 = vector.load %arg11[%c0_22, %c0_23] : memref<2x1xf32, #tpu.memory_space<vmem>>, vector<2x1xf32>
      tpu.vector_store %arg11[%c0_22, %c0_23], %15 {strides = array<i32>} : memref<2x1xf32, #tpu.memory_space<vmem>>, vector<2x1xf32>,
      %c0_24 = arith.constant 0 : index
      %c0_25 = arith.constant 0 : index
      %30 = vector.load %arg12[%c0_24, %c0_25] : memref<2x32xf32, #tpu.memory_space<vmem>>, vector<2x32xf32>
      tpu.vector_store %arg12[%c0_24, %c0_25], %7 {strides = array<i32>} : memref<2x32xf32, #tpu.memory_space<vmem>>, vector<2x32xf32>,
    } else {
    }
    %c0_i32_11 = arith.constant 0 : i32
    %19 = arith.cmpi sgt, %arg0, %c0_i32_11 : i32
    %20 = arith.extui %19 : i1 to i32
    %c0_i32_12 = arith.constant 0 : i32
    %21 = arith.cmpi ne, %20, %c0_i32_12 : i32
    scf.if %21 {
      %c0_19 = arith.constant 0 : index
      %c0_20 = arith.constant 0 : index
      %c0_21 = arith.constant 0 : index
      %27 = vector.load %arg8[%c0_19, %c0_20, %c0_21] : memref<2x8x32xf32, #tpu.memory_space<vmem>>, vector<2x8x32xf32>
      %28 = arith.mulf %27, %2 : vector<2x8x32xf32>
      %cst_22 = arith.constant dense<0.000000e+00> : vector<2x8xf32>
      %29 = vector.multi_reduction <add>, %28, %cst_22 [2] : vector<2x8x32xf32> to vector<2x8xf32>
      %c0_23 = arith.constant 0 : index
      %c0_24 = arith.constant 0 : index
      %30 = vector.load %arg9[%c0_23, %c0_24] : memref<2x8xf32, #tpu.memory_space<vmem>>, vector<2x8xf32>
      %31 = arith.mulf %30, %4 : vector<2x8xf32>
      %cst_25 = arith.constant 1.000000e-16 : f32
      %32 = vector.broadcast %cst_25 : f32 to vector<2x8xf32>
      %33 = arith.maximumf %31, %32 : vector<2x8xf32>
      %34 = math.rsqrt %33 : vector<2x8xf32>
      %35 = arith.mulf %29, %34 : vector<2x8xf32>
      %c0_26 = arith.constant 0 : index
      %c0_27 = arith.constant 0 : index
      %36 = vector.load %arg10[%c0_26, %c0_27] : memref<2x8xf32, #tpu.memory_space<vmem>>, vector<2x8xf32>
      %37 = arith.addf %36, %35 : vector<2x8xf32>
      %c0_28 = arith.constant 0 : index
      %c0_29 = arith.constant 0 : index
      %38 = vector.load %arg10[%c0_28, %c0_29] : memref<2x8xf32, #tpu.memory_space<vmem>>, vector<2x8xf32>
      tpu.vector_store %arg10[%c0_28, %c0_29], %37 {strides = array<i32>} : memref<2x8xf32, #tpu.memory_space<vmem>>, vector<2x8xf32>,
      %c0_30 = arith.constant 0 : index
      %c0_31 = arith.constant 0 : index
      %39 = vector.load %arg11[%c0_30, %c0_31] : memref<2x1xf32, #tpu.memory_space<vmem>>, vector<2x1xf32>
      %40 = arith.cmpf ogt, %15, %39 : vector<2x1xf32>
      %c0_32 = arith.constant 0 : index
      %c0_33 = arith.constant 0 : index
      %41 = vector.load %arg11[%c0_32, %c0_33] : memref<2x1xf32, #tpu.memory_space<vmem>>, vector<2x1xf32>
      %42 = arith.select %40, %15, %41 : vector<2x1xi1>, vector<2x1xf32>
      %c0_34 = arith.constant 0 : index
      %c0_35 = arith.constant 0 : index
      %43 = vector.load %arg11[%c0_34, %c0_35] : memref<2x1xf32, #tpu.memory_space<vmem>>, vector<2x1xf32>
      tpu.vector_store %arg11[%c0_34, %c0_35], %42 {strides = array<i32>} : memref<2x1xf32, #tpu.memory_space<vmem>>, vector<2x1xf32>,
      %c0_36 = arith.constant 0 : index
      %c0_37 = arith.constant 0 : index
      %44 = vector.load %arg12[%c0_36, %c0_37] : memref<2x32xf32, #tpu.memory_space<vmem>>, vector<2x32xf32>
      %45 = vector.shape_cast %40 : vector<2x1xi1> to vector<2x1xi1>
      %46 = vector.broadcast %45 : vector<2x1xi1> to vector<2x32xi1>
      %47 = arith.select %46, %7, %44 : vector<2x32xi1>, vector<2x32xf32>
      %c0_38 = arith.constant 0 : index
      %c0_39 = arith.constant 0 : index
      %48 = vector.load %arg12[%c0_38, %c0_39] : memref<2x32xf32, #tpu.memory_space<vmem>>, vector<2x32xf32>
      tpu.vector_store %arg12[%c0_38, %c0_39], %47 {strides = array<i32>} : memref<2x32xf32, #tpu.memory_space<vmem>>, vector<2x32xf32>,
    } else {
    }
    %c0_13 = arith.constant 0 : index
    %c0_14 = arith.constant 0 : index
    %c0_15 = arith.constant 0 : index
    %22 = vector.load %arg8[%c0_13, %c0_14, %c0_15] : memref<2x8x32xf32, #tpu.memory_space<vmem>>, vector<2x8x32xf32>
    tpu.vector_store %arg8[%c0_13, %c0_14, %c0_15], %2 {strides = array<i32>} : memref<2x8x32xf32, #tpu.memory_space<vmem>>, vector<2x8x32xf32>,
    %c0_16 = arith.constant 0 : index
    %c0_17 = arith.constant 0 : index
    %23 = vector.load %arg9[%c0_16, %c0_17] : memref<2x8xf32, #tpu.memory_space<vmem>>, vector<2x8xf32>
    tpu.vector_store %arg9[%c0_16, %c0_17], %4 {strides = array<i32>} : memref<2x8xf32, #tpu.memory_space<vmem>>, vector<2x8xf32>,
    %c9_i32 = arith.constant 9 : i32
    %24 = arith.cmpi eq, %arg0, %c9_i32 : i32
    %25 = arith.extui %24 : i1 to i32
    %c0_i32_18 = arith.constant 0 : i32
    %26 = arith.cmpi ne, %25, %c0_i32_18 : i32
    scf.if %26 {
      %c0_19 = arith.constant 0 : index
      %c0_20 = arith.constant 0 : index
      %27 = vector.load %arg10[%c0_19, %c0_20] : memref<2x8xf32, #tpu.memory_space<vmem>>, vector<2x8xf32>
      %cst_21 = arith.constant 0.111111112 : f32
      %28 = vector.broadcast %cst_21 : f32 to vector<2x8xf32>
      %29 = arith.mulf %27, %28 : vector<2x8xf32>
      %30 = vector.shape_cast %29 : vector<2x8xf32> to vector<1x2x8xf32>
      %cst_22 = arith.constant dense<0x7F800000> : vector<1xf32>
      %31 = vector.multi_reduction <minimumf>, %30, %cst_22 [1, 2] : vector<1x2x8xf32> to vector<1xf32>
      %32 = vector.shape_cast %31 : vector<1xf32> to vector<1x1x1xf32>
      %33 = vector.extract %32[0, 0, 0] : f32 from vector<1x1x1xf32>
      %34 = vector.shape_cast %29 : vector<2x8xf32> to vector<1x2x8xf32>
      %cst_23 = arith.constant dense<0xFF800000> : vector<1xf32>
      %35 = vector.multi_reduction <maximumf>, %34, %cst_23 [1, 2] : vector<1x2x8xf32> to vector<1xf32>
      %36 = vector.shape_cast %35 : vector<1xf32> to vector<1x1x1xf32>
      %37 = vector.extract %36[0, 0, 0] : f32 from vector<1x1x1xf32>
      %38 = arith.subf %37, %33 : f32
      %cst_24 = arith.constant 9.99999996E-13 : f32
      %39 = arith.maximumf %38, %cst_24 : f32
      %40 = arith.subf %37, %33 : f32
      %41 = arith.divf %40, %39 : f32
      %cst_25 = arith.constant 0.899999976 : f32
      %42 = arith.cmpf ogt, %41, %cst_25 : f32
      %43 = arith.extui %42 : i1 to i32
      %44 = arith.sitofp %43 : i32 to f32
      %cst_26 = arith.constant 1.000000e+00 : f32
      %45 = vector.broadcast %cst_26 : f32 to vector<1x1xf32>
      %46 = vector.broadcast %44 : f32 to vector<1x1xf32>
      %47 = arith.mulf %46, %45 : vector<1x1xf32>
      %c0_27 = arith.constant 0 : index
      %c0_28 = arith.constant 0 : index
      %48 = vector.load %arg6[%c0_27, %c0_28] : memref<1x1xf32, #tpu.memory_space<vmem>>, vector<1x1xf32>
      tpu.vector_store %arg6[%c0_27, %c0_28], %47 {strides = array<i32>} : memref<1x1xf32, #tpu.memory_space<vmem>>, vector<1x1xf32>,
      %c0_29 = arith.constant 0 : index
      %c0_30 = arith.constant 0 : index
      %49 = vector.load %arg12[%c0_29, %c0_30] : memref<2x32xf32, #tpu.memory_space<vmem>>, vector<2x32xf32>
      %c0_31 = arith.constant 0 : index
      %c0_32 = arith.constant 0 : index
      %50 = vector.load %arg4[%c0_31, %c0_32] : memref<32x32xf32, #tpu.memory_space<vmem>>, vector<32x32xf32>
      %cst_33 = arith.constant dense<0.000000e+00> : vector<2x32xf32>
      %51 = tpu.matmul %49, %50, %cst_33 {dimension_numbers = #tpu.dot_dimension_numbers<[1], [0], [0], [1], [0, 0, 1, 1], [], []>} : vector<2x32xf32>, vector<32x32xf32>, vector<2x32xf32> -> vector<2x32xf32>
      %c0_34 = arith.constant 0 : index
      %c0_35 = arith.constant 0 : index
      %52 = vector.load %arg5[%c0_34, %c0_35] : memref<1x32xf32, #tpu.memory_space<vmem>>, vector<1x32xf32>
      %53 = vector.broadcast %52 : vector<1x32xf32> to vector<2x32xf32>
      %54 = arith.addf %51, %53 : vector<2x32xf32>
      %55 = vector.broadcast %44 : f32 to vector<2x32xf32>
      %56 = arith.mulf %54, %55 : vector<2x32xf32>
      %c0_36 = arith.constant 0 : index
      %c0_37 = arith.constant 0 : index
      %57 = vector.load %arg7[%c0_36, %c0_37] : memref<2x32xf32, #tpu.memory_space<vmem>>, vector<2x32xf32>
      tpu.vector_store %arg7[%c0_36, %c0_37], %56 {strides = array<i32>} : memref<2x32xf32, #tpu.memory_space<vmem>>, vector<2x32xf32>,
    } else {
    }
    return
  }
  func.func @transform_0(%arg0: i32) -> (i32, i32, i32, i32) {
    %c3_i32 = arith.constant 3 : i32
    %0 = arith.addi %c3_i32, %arg0 : i32
    %c0_i32 = arith.constant 0 : i32
    %c0_i32_0 = arith.constant 0 : i32
    %c0_i32_1 = arith.constant 0 : i32
    %c0_i32_2 = arith.constant 0 : i32
    return %c0_i32, %0, %c0_i32_0, %c0_i32_1 : i32, i32, i32, i32
  }
  func.func @transform_1(%arg0: i32) -> (i32, i32) {
    %c0_i32 = arith.constant 0 : i32
    %c0_i32_0 = arith.constant 0 : i32
    %c0_i32_1 = arith.constant 0 : i32
    return %c0_i32, %c0_i32_0 : i32, i32
  }
  func.func @transform_2(%arg0: i32) -> (i32, i32) {
    %c0_i32 = arith.constant 0 : i32
    %c0_i32_0 = arith.constant 0 : i32
    %c0_i32_1 = arith.constant 0 : i32
    return %c0_i32, %c0_i32_0 : i32, i32
  }
  func.func @transform_3(%arg0: i32) -> (i32, i32) {
    %c0_i32 = arith.constant 0 : i32
    %c0_i32_0 = arith.constant 0 : i32
    %c0_i32_1 = arith.constant 0 : i32
    return %c0_i32, %c0_i32_0 : i32, i32
  }
  func.func @transform_4(%arg0: i32) -> (i32, i32) {
    %c0_i32 = arith.constant 0 : i32
    %c0_i32_0 = arith.constant 0 : i32
    %c0_i32_1 = arith.constant 0 : i32
    return %c0_i32, %c0_i32_0 : i32, i32
  }
  func.func @transform_5(%arg0: i32) -> (i32, i32) {
    %c0_i32 = arith.constant 0 : i32
    %c0_i32_0 = arith.constant 0 : i32
    %c0_i32_1 = arith.constant 0 : i32
    return %c0_i32, %c0_i32_0 : i32, i32
  }
  func.func @transform_6(%arg0: i32) -> (i32, i32) {
    %c0_i32 = arith.constant 0 : i32
    %c0_i32_0 = arith.constant 0 : i32
    %c0_i32_1 = arith.constant 0 : i32
    return %c0_i32, %c0_i32_0 : i32, i32
  }
}

</mosaic_0001>

<llo_original>
// kernel: dtp_forward.1
$region0: #{dtp_forward.1}
  #allocation0 [shape = 'u32[]', space=smem, size = 0x4, offset = 0x4, fixed_abs, tag = 'smem constant byte address 0x4 - core index']
  #allocation1 [shape = 'u32[72,128]{1,0:T(1,128)}', space=vmem, size = 0x9000, scoped, tag = 'internal scratch']
  #allocation2 [shape = 'f32[2,8,32]{2,1,0:T(8,128)}', space=vmem, size = 0x2000, scoped, tag = 'scratch operand']
  #allocation3 [shape = 'f32[2,8]{1,0:T(2,128)}', space=vmem, size = 0x400, scoped, tag = 'scratch operand']
  #allocation4 [shape = 'f32[2,8]{1,0:T(2,128)}', space=vmem, size = 0x400, scoped, tag = 'scratch operand']
  #allocation5 [shape = 'f32[2,1]{1,0:T(2,128)}', space=vmem, size = 0x400, scoped, tag = 'scratch operand']
  #allocation6 [shape = 'f32[2,32]{1,0:T(2,128)}', space=vmem, size = 0x400, scoped, tag = 'scratch operand']
  #allocation7 [shape = 'f32[1,1]{1,0:T(1,128)S(1)}', space=vmem, size = 0x200, scoped, tag = 'scoped memory for dtp_forward.1']
  %s0 = inlined_call_operand.hbm [shape: bf16[2,16,8,32], index: 0, kind: input, shape index: {}]
  %s1 = inlined_call_operand.vmem [shape: f32[1,32], index: 1, kind: input, shape index: {}]
  %s2 = inlined_call_operand.<no memory space> [shape: f32[1,1], index: 2, kind: input, shape index: {}]
  %s3 = inlined_call_operand.hbm [shape: f32[32,32], index: 3, kind: input, shape index: {}]
  %s4 = inlined_call_operand.vmem [shape: f32[1,32], index: 4, kind: input, shape index: {}]
  %s5 = inlined_call_operand.hbm [shape: f32[1,1], index: 5, kind: output, shape index: {0}]
  %s6 = inlined_call_operand.vmem [shape: f32[2,32], index: 6, kind: output, shape index: {1}]
  %7 = xla_tuple %s5, %s6
  %s8 = sld [smem:[#allocation0]]
  $region81: #{dtp_forward.1} parent=0
    _
  %s10 = ssub.s32 1, %s8
  %s11 = scalar_select 0, %s10, %s8
  %v12 = vstv %s2
  %13 = vst [vmem:[#allocation7] sm:$0x1] %v12
  $region1: #{dtp_forward.1} parent=0
    #allocation8 [shape = 'u8[8192]{0}', space=vmem, size = 0x2000, scoped, tag = 'input window, operand 0']
    #allocation9 [shape = 's32[2]{0}', space=sflag, size = 0x8, scoped, tag = 'scoped memory for dtp_forward.1']
    #allocation10 [shape = 's32[2]{0}', space=sflag, size = 0x8, scoped, tag = 'scoped memory for dtp_forward.1']
    #allocation11 [shape = 'u8[16384]{0}', space=vmem, size = 0x4000, scoped, tag = 'input window, operand 3, single buffered']
    #allocation12 [shape = 's32[1]{0}', space=sflag, size = 0x4, scoped, tag = 'scoped memory for dtp_forward.1']
    #allocation13 [shape = 'u8[512]{0}', space=vmem, size = 0x400, scoped, tag = 'output window, operand 0, single buffered']
    %14 = vsyncpa [#allocation9], 0
    %s15 = scalar_lea.sflag [#allocation9], 1
    %16 = vsyncpa %s15, 0
    %17 = vsyncpa [#allocation12], 0
    %18 = vsyncpa [#allocation10], 0
    loop: start=0, step=1, limit=12
    $region2: #{dtp_forward.1} parent=1 // loop_pre_header
      _
    $region3: #{dtp_forward.1} parent=1 // loop_header
      %s20 = sphi 0, %s24
      %p21 = scmp.ge.s32.totalorder %s20, 12
      %s32 = sphi 0, %s34
      %s35 = sphi 0, %s32
      %s36 = sphi 0, %s35
      %s52 = sphi 0, %s36
      %s56 = sphi 0, %s56
      %s58 = sphi 0, %s56
      %s59 = sphi 0, %s58
      %s73 = sphi 0, %s59
      %s77 = sphi 0, %s77
      %s79 = sphi 0, %s77
      %s80 = sphi 0, %s79
      %s94 = sphi 0, %s80
      %s98 = sphi 0, %s98
      %s100 = sphi 0, %s98
      %s101 = sphi 0, %s100
      %s115 = sphi 0, %s101
      %s119 = sphi 0, %s119
      %s121 = sphi 0, %s119
      %s122 = sphi 0, %s121
      %s136 = sphi 0, %s122
      %s140 = sphi 0, %s140
      %s142 = sphi 0, %s140
      %s143 = sphi 0, %s142
      %s157 = sphi 0, %s143
      %s161 = sphi 0, %s161
      %s163 = sphi 0, %s161
      %s164 = sphi 0, %s163
      %s178 = sphi 0, %s164
    $region4: #{dtp_forward.1} parent=1 // loop_header_branch
      %23 = sbr.rel (%p21) target = $region8
    $region5: #{dtp_forward.1} parent=1 // loop_body
      %s25 = ssub.s32 %s20, 1
      %s26 = ssub.s32 %s20, 2
      %s27 = sadd.s32 %s20, 1
      %s28 = sadd.s32 %s20, 3
      %s29 = sadd.s32 %s27, 3
      %s30 = ssub.s32 %s28, %s29
      %p31 = scmp.eq.s32.totalorder %s30, 0
      %s33 = sadd.s32 %s32, 1
      %s34 = scalar_select %p31, %s32, %s33
      %p37 = pneg %p31
      %p38 = scmp.eq.s32.totalorder %s20, 9
      %p39 = por %p37, %p38
      %p40 = scmp.ne.s32.totalorder %s32, %s35
      %p41 = scmp.eq.s32.totalorder %s20, 0
      %p42 = por %p40, %p41
      %p43 = scmp.ne.s32.totalorder %s32, %s35
      %p44 = scmp.eq.s32.totalorder %s25, 9
      %p45 = por %p43, %p44
      %p46 = scmp.ne.s32.totalorder %s35, %s36
      %p47 = scmp.eq.s32.totalorder %s25, 0
      %p48 = por %p46, %p47
      %p49 = scmp.ne.s32.totalorder %s35, %s36
      %p50 = scmp.eq.s32.totalorder %s26, 9
      %p51 = por %p49, %p50
      %p53 = scmp.ne.s32.totalorder %s36, %s52
      %p54 = scmp.eq.s32.totalorder %s26, 0
      %p55 = por %p53, %p54
      %s57 = sadd.s32 %s56, 1
      %p60 = scmp.eq.s32.totalorder %s20, 9
      %p61 = scmp.ne.s32.totalorder %s56, %s58
      %p62 = scmp.eq.s32.totalorder %s20, 0
      %p63 = por %p61, %p62
      %p64 = scmp.ne.s32.totalorder %s56, %s58
      %p65 = scmp.eq.s32.totalorder %s25, 9
      %p66 = por %p64, %p65
      %p67 = scmp.ne.s32.totalorder %s58, %s59
      %p68 = scmp.eq.s32.totalorder %s25, 0
      %p69 = por %p67, %p68
      %p70 = scmp.ne.s32.totalorder %s58, %s59
      %p71 = scmp.eq.s32.totalorder %s26, 9
      %p72 = por %p70, %p71
      %p74 = scmp.ne.s32.totalorder %s59, %s73
      %p75 = scmp.eq.s32.totalorder %s26, 0
      %p76 = por %p74, %p75
      %s78 = sadd.s32 %s77, 1
      %p81 = scmp.eq.s32.totalorder %s20, 9
      %p82 = scmp.ne.s32.totalorder %s77, %s79
      %p83 = scmp.eq.s32.totalorder %s20, 0
      %p84 = por %p82, %p83
      %p85 = scmp.ne.s32.totalorder %s77, %s79
      %p86 = scmp.eq.s32.totalorder %s25, 9
      %p87 = por %p85, %p86
      %p88 = scmp.ne.s32.totalorder %s79, %s80
      %p89 = scmp.eq.s32.totalorder %s25, 0
      %p90 = por %p88, %p89
      %p91 = scmp.ne.s32.totalorder %s79, %s80
      %p92 = scmp.eq.s32.totalorder %s26, 9
      %p93 = por %p91, %p92
      %p95 = scmp.ne.s32.totalorder %s80, %s94
      %p96 = scmp.eq.s32.totalorder %s26, 0
      %p97 = por %p95, %p96
      %s99 = sadd.s32 %s98, 1
      %p102 = scmp.eq.s32.totalorder %s20, 9
      %p103 = scmp.ne.s32.totalorder %s98, %s100
      %p104 = scmp.eq.s32.totalorder %s20, 0
      %p105 = por %p103, %p104
      %p106 = scmp.ne.s32.totalorder %s98, %s100
      %p107 = scmp.eq.s32.totalorder %s25, 9
      %p108 = por %p106, %p107
      %p109 = scmp.ne.s32.totalorder %s100, %s101
      %p110 = scmp.eq.s32.totalorder %s25, 0
      %p111 = por %p109, %p110
      %p112 = scmp.ne.s32.totalorder %s100, %s101
      %p113 = scmp.eq.s32.totalorder %s26, 9
      %p114 = por %p112, %p113
      %p116 = scmp.ne.s32.totalorder %s101, %s115
      %p117 = scmp.eq.s32.totalorder %s26, 0
      %p118 = por %p116, %p117
      %s120 = sadd.s32 %s119, 1
      %p123 = scmp.eq.s32.totalorder %s20, 9
      %p124 = scmp.ne.s32.totalorder %s119, %s121
      %p125 = scmp.eq.s32.totalorder %s20, 0
      %p126 = por %p124, %p125
      %p127 = scmp.ne.s32.totalorder %s119, %s121
      %p128 = scmp.eq.s32.totalorder %s25, 9
      %p129 = por %p127, %p128
      %p130 = scmp.ne.s32.totalorder %s121, %s122
      %p131 = scmp.eq.s32.totalorder %s25, 0
      %p132 = por %p130, %p131
      %p133 = scmp.ne.s32.totalorder %s121, %s122
      %p134 = scmp.eq.s32.totalorder %s26, 9
      %p135 = por %p133, %p134
      %p137 = scmp.ne.s32.totalorder %s122, %s136
      %p138 = scmp.eq.s32.totalorder %s26, 0
      %p139 = por %p137, %p138
      %s141 = sadd.s32 %s140, 1
      %p144 = scmp.eq.s32.totalorder %s20, 9
      %p145 = scmp.ne.s32.totalorder %s140, %s142
      %p146 = scmp.eq.s32.totalorder %s20, 0
      %p147 = por %p145, %p146
      %p148 = scmp.ne.s32.totalorder %s140, %s142
      %p149 = scmp.eq.s32.totalorder %s25, 9
      %p150 = por %p148, %p149
      %p151 = scmp.ne.s32.totalorder %s142, %s143
      %p152 = scmp.eq.s32.totalorder %s25, 0
      %p153 = por %p151, %p152
      %p154 = scmp.ne.s32.totalorder %s142, %s143
      %p155 = scmp.eq.s32.totalorder %s26, 9
      %p156 = por %p154, %p155
      %p158 = scmp.ne.s32.totalorder %s143, %s157
      %p159 = scmp.eq.s32.totalorder %s26, 0
      %p160 = por %p158, %p159
      %s162 = sadd.s32 %s161, 1
      %p165 = scmp.eq.s32.totalorder %s20, 9
      %p166 = scmp.ne.s32.totalorder %s161, %s163
      %p167 = scmp.eq.s32.totalorder %s20, 0
      %p168 = por %p166, %p167
      %p169 = scmp.ne.s32.totalorder %s161, %s163
      %p170 = scmp.eq.s32.totalorder %s25, 9
      %p171 = por %p169, %p170
      %p172 = scmp.ne.s32.totalorder %s163, %s164
      %p173 = scmp.eq.s32.totalorder %s25, 0
      %p174 = por %p172, %p173
      %p175 = scmp.ne.s32.totalorder %s163, %s164
      %p176 = scmp.eq.s32.totalorder %s26, 9
      %p177 = por %p175, %p176
      %p179 = scmp.ne.s32.totalorder %s164, %s178
      %p180 = scmp.eq.s32.totalorder %s26, 0
      %p181 = por %p179, %p180
      %p182 = scmp.le.s32.totalorder 1, %s20
      %p183 = scmp.lt.s32.totalorder %s20, 11
      %p184 = pnand %p182, %p183
      %p185 = pneg %p184
      // Predicated region
      $region9: #{dtp_forward.1} parent=5 // pred_check
        _
      $region10: #{dtp_forward.1} parent=5 // pred_check_branch
        %187 = sbr.rel (%p184) target = $region12
      $region11: #{dtp_forward.1} parent=5 // pred_region
        %s188 = ssub.s32 %s20, 1
        // Predicated region
        $region13: #{dtp_forward.1} parent=11 // pred_check
          %p189 = pneg %p69
        $region14: #{dtp_forward.1} parent=11 // pred_check_branch
          %191 = sbr.rel (%p189) target = $region16
        $region15: #{dtp_forward.1} parent=11 // pred_region
          _
        $region16: #{dtp_forward.1} parent=11 // pred_fallthru
          _
        // Predicated region
        $region17: #{dtp_forward.1} parent=11 // pred_check
          %p192 = pneg %p90
        $region18: #{dtp_forward.1} parent=11 // pred_check_branch
          %194 = sbr.rel (%p192) target = $region20
        $region19: #{dtp_forward.1} parent=11 // pred_region
          _
        $region20: #{dtp_forward.1} parent=11 // pred_fallthru
          _
        // Predicated region
        $region21: #{dtp_forward.1} parent=11 // pred_check
          %p195 = pneg %p111
        $region22: #{dtp_forward.1} parent=11 // pred_check_branch
          %197 = sbr.rel (%p195) target = $region24
        $region23: #{dtp_forward.1} parent=11 // pred_region
          %199 = vsyncadd [#allocation12], 0
          %s200 = sshll.u32 %s3, 4
          %s201 = int_to_ptr.hbm [resolvable:$true] %s200
          %s202 = sshll.u32 [#allocation11], 4
          %s203 = int_to_ptr.vmem [resolvable:$true] %s202
          %208 = dma.hbm_to_vmem [thread:$0]  %s201, 512, %s203, [#allocation12], 128, 128, 8
        $region24: #{dtp_forward.1} parent=11 // pred_fallthru
          _
        // Predicated region
        $region25: #{dtp_forward.1} parent=11 // pred_check
          %p209 = pneg %p132
        $region26: #{dtp_forward.1} parent=11 // pred_check_branch
          %211 = sbr.rel (%p209) target = $region28
        $region27: #{dtp_forward.1} parent=11 // pred_region
          _
        $region28: #{dtp_forward.1} parent=11 // pred_fallthru
          _
      $region12: #{dtp_forward.1} parent=5 // pred_fallthru
        _
      %p212 = scmp.lt.s32.totalorder %s20, 10
      // Predicated region
      $region29: #{dtp_forward.1} parent=5 // pred_check
        %p213 = pneg %p212
      $region30: #{dtp_forward.1} parent=5 // pred_check_branch
        %215 = sbr.rel (%p213) target = $region32
      $region31: #{dtp_forward.1} parent=5 // pred_region
        // Predicated region
        $region33: #{dtp_forward.1} parent=31 // pred_check
          %p216 = pneg %p42
        $region34: #{dtp_forward.1} parent=31 // pred_check_branch
          %218 = sbr.rel (%p216) target = $region36
        $region35: #{dtp_forward.1} parent=31 // pred_region
          %s219 = sand.u32 %s32, 1
          %s220 = scalar_lea.sflag [#allocation9], %s219
          %s221 = sand.u32 %s32, 1
          %s222 = smul.addr %s221, 8
          %s223 = scalar_lea.vmem [#allocation8], %s222
          %s224 = sadd.s32 %s20, 3
          %226 = vsyncadd %s220, 0
          %s227 = smul.addr %s224, 4
          %s228 = scalar_lea.hbm %s0, %s227
          %s229 = sshll.u32 %s228, 4
          %s230 = int_to_ptr.hbm [resolvable:$true] %s229
          %s231 = sshll.u32 %s223, 4
          %s232 = int_to_ptr.vmem [resolvable:$true] %s231
          %237 = dma.hbm_to_vmem [thread:$0]  %s230, 128, %s232, %s220, 1024, 64, 4
        $region36: #{dtp_forward.1} parent=31 // pred_fallthru
          _
      $region32: #{dtp_forward.1} parent=5 // pred_fallthru
        _
      %p238 = scmp.le.s32.totalorder 1, %s20
      %p239 = scmp.lt.s32.totalorder %s20, 11
      %p240 = pnand %p238, %p239
      %p241 = pneg %p240
      // Predicated region
      $region37: #{dtp_forward.1} parent=5 // pred_check
        _
      $region38: #{dtp_forward.1} parent=5 // pred_check_branch
        %243 = sbr.rel (%p240) target = $region40
      $region39: #{dtp_forward.1} parent=5 // pred_region
        %s244 = ssub.s32 %s20, 1
        %s245 = sand.u32 %s35, 1
        %s246 = scalar_lea.sflag [#allocation9], %s245
        %s247 = sand.u32 %s35, 1
        %s248 = smul.addr %s247, 8
        %s249 = scalar_lea.vmem [#allocation8], %s248
        // Predicated region
        $region41: #{dtp_forward.1} parent=39 // pred_check
          %p250 = pneg %p48
        $region42: #{dtp_forward.1} parent=39 // pred_check_branch
          %252 = sbr.rel (%p250) target = $region44
        $region43: #{dtp_forward.1} parent=39 // pred_region
          %254 = dma.done %s246, 128
        $region44: #{dtp_forward.1} parent=39 // pred_fallthru
          _
        // Predicated region
        $region45: #{dtp_forward.1} parent=39 // pred_check
          %p255 = pneg %p111
        $region46: #{dtp_forward.1} parent=39 // pred_check_branch
          %257 = sbr.rel (%p255) target = $region48
        $region47: #{dtp_forward.1} parent=39 // pred_region
          %259 = dma.done [#allocation12], 512
        $region48: #{dtp_forward.1} parent=39 // pred_fallthru
          _
        %s260 = sand.u32 %s35, 1
        %s261 = scalar_lea.sflag [#allocation9], %s260
        %s262 = sand.u32 %s35, 1
        %s263 = smul.addr %s262, 8
        %s264 = scalar_lea.vmem [#allocation8], %s263
        %p265 = pneg %p48
        %p266 = pneg %p45
        %p267 = pneg %p69
        %p268 = pneg %p66
        %p269 = pneg %p90
        %p270 = pneg %p87
        %p271 = pneg %p111
        %p272 = pneg %p108
        %p273 = pneg %p132
        %p274 = pneg %p129
        %p275 = pneg %p153
        %p276 = pneg %p150
        %p277 = pneg %p174
        %p278 = pneg %p171
        %s279 = sadd.s32 %s25, 3
        %v280 = vld [vmem:[%s249] sm:$0xf]
        %v281 = vld [vmem:[%s249 + $0x4] sm:$0xf]
        %v282 = vunpack.c.l.bf16 %v280
        %v283 = vunpack.c.l.bf16 %v281
        %v284 = vmul.f32 %v282, %v282
        %v285 = vmul.f32 %v283, %v283
        %vm286 = vcmask 261120
        %v287 = vsel %vm286, %v284, 0.0
        %288 = vadd.xlane.f32.xlu0 %v287
        %v289 = vpop.xlane.xlu0 %288
        %v290 = vsel %vm286, %v285, 0.0
        %291 = vadd.xlane.f32.xlu0 %v290
        %v292 = vpop.xlane.xlu0 %291
        %v293 = vsel %vm286, %v282, 0.0
        %v294 = vrot.slane %v293, 4
        %v295 = vadd.f32 %v293, %v294
        %v296 = vrot.slane %v295, 2
        %v297 = vadd.f32 %v295, %v296
        %v298 = vrot.slane %v297, 1
        %v299 = vadd.f32 %v297, %v298
        %v300 = vsel %vm286, %v283, 0.0
        %v301 = vrot.slane %v300, 4
        %v302 = vadd.f32 %v300, %v301
        %v303 = vrot.slane %v302, 2
        %v304 = vadd.f32 %v302, %v303
        %v305 = vrot.slane %v304, 1
        %v306 = vadd.f32 %v304, %v305
        %v307 = vrcp.pop 8.0
        %v308 = vmul.f32 8.0, %v307
        %v309 = vsub.f32 1.0, %v308
        %v310 = vmul.f32 %v307, %v309
        %v311 = vadd.f32 %v307, %v310
        %vm312 = vweird.f32 %v307
        %v313 = vsel %vm312, %v307, %v311
        %v314 = vmul.f32 %v299, %v313
        %v315 = vmul.f32 %v306, %v313
        %v316 = vld [vmem:[%s1] sm:$0x1]
        %v318 = vperm.slane %v316, 0
        %v320 = vmul.f32 %v314, %v318
        %v321 = vmul.f32 %v315, %v318
        %v324 = vrot.slane %v321, 7
        %vm325 = vcmask 1041409
        %v326 = vsel %vm325, %v324, %v320
        %vm328 = vcmask 254976
        %v329 = vsel %vm328, %v326, 0.0
        %330 = vadd.xlane.f32.xlu0 %v329
        %v331 = vpop.xlane.xlu0 %330
        %v332 = vld [vmem:[#allocation7] sm:$0x1]
        %v334 = vperm.slane %v332, 0
        %v336 = vadd.f32 %v331, %v334
        %p337 = scmp.eq.s32.totalorder %s25, 0
        // Predicated region
        $region49: #{dtp_forward.1} parent=39 // pred_check
          %p338 = pneg %p337
        $region50: #{dtp_forward.1} parent=39 // pred_check_branch
          %340 = sbr.rel (%p338) target = $region52
        $region51: #{dtp_forward.1} parent=39 // pred_region
          %vm341 = vcmask 58368
          %342 = vst.msk [vmem:[#allocation4] sm:$0x3] %vm341, 0.0
          %vm343 = vcmask 1024
          %344 = vst.msk [vmem:[#allocation5] sm:$0x3] %vm343, %v336
          %v347 = vsel %vm325, %v315, %v314
          %349 = vst.msk [vmem:[#allocation6] sm:$0x3] %vm328, %v347
        $region52: #{dtp_forward.1} parent=39 // pred_fallthru
          _
        %p350 = scmp.gt.s32.totalorder %s25, 0
        // Predicated region
        $region53: #{dtp_forward.1} parent=39 // pred_check
          %p351 = pneg %p350
        $region54: #{dtp_forward.1} parent=39 // pred_check_branch
          %353 = sbr.rel (%p351) target = $region56
        $region55: #{dtp_forward.1} parent=39 // pred_region
          %v354 = vld [vmem:[#allocation2] sm:$0xff]
          %v355 = vld [vmem:[#allocation2 + $0x8] sm:$0xff]
          %v356 = vmul.f32 %v354, %v282
          %v357 = vmul.f32 %v355, %v283
          %v358 = vsel %vm286, %v356, 0.0
          %359 = vadd.xlane.f32.xlu0 %v358
          %v360 = vpop.xlane.xlu0 %359
          %v361 = vsel %vm286, %v357, 0.0
          %362 = vadd.xlane.f32.xlu0 %v361
          %v363 = vpop.xlane.xlu0 %362
          %v364 = vld [vmem:[#allocation3] sm:$0x3]
          %v367 = vlaneseq
          %v368 = vand.u32 %v367, 127
          %v369 = vperm.slane %v289, %v368
          %v370 = vperm.slane %v292, %v368
          %v371 = vsel %vm325, %v370, %v369
          %v373 = vmul.f32 %v364, %v371
          %v374 = vmax.f32 %v373, 1e-16
          %v375 = vrsqrt.pop %v374
          %v376 = vmul.f32 %v375, %v374
          %v377 = vmul.f32 %v376, %v375
          %v378 = vmul.f32 0.5, %v377
          %v379 = vsub.f32 1.5, %v378
          %v380 = vmul.f32 %v375, %v379
          %vm381 = vweird.f32 %v374
          %vm382 = vweird.f32 %v375
          %vm383 = vmor %vm381, %vm382
          %v384 = vsel %vm383, %v375, %v380
          %v386 = vperm.slane %v384, 0
          %v387 = vlaneseq
          %v388 = vshrl.u32 %v387, 7
          %390 = vset.pattern.permute.xlu0 %v388
          %391 = vperm.xlu0 %390, %v386
          %v392 = vpop.permute.xlu0 %391
          %v393 = vperm.slane %v384, 1
          %v394 = vlaneseq
          %v395 = vshrl.u32 %v394, 7
          %397 = vset.pattern.permute.xlu0 %v395
          %398 = vperm.xlu0 %397, %v393
          %v399 = vpop.permute.xlu0 %398
          %v402 = vmul.f32 %v360, %v392
          %v403 = vmul.f32 %v363, %v399
          %v404 = vld [vmem:[#allocation4] sm:$0x3]
          %407 = vset.pattern.permute.xlu0 0
          %408 = vperm.xlu0 %407, %v402
          %v409 = vpop.permute.xlu0 %408
          %410 = vset.pattern.permute.xlu0 0
          %411 = vperm.xlu0 %410, %v403
          %v412 = vpop.permute.xlu0 %411
          %v413 = vperm.slane %v409, %v368
          %v414 = vperm.slane %v412, %v368
          %v415 = vsel %vm325, %v414, %v413
          %v417 = vadd.f32 %v404, %v415
          %vm418 = vcmask 58368
          %419 = vst.msk [vmem:[#allocation4] sm:$0x3] %vm418, %v417
          %v420 = vld [vmem:[#allocation5] sm:$0x3]
          %vm421 = vcmp.gt.f32.partialorder %v336, %v420
          %v422 = vsel %vm421, %v336, %v420
          %vm423 = vcmask 1024
          %424 = vst.msk [vmem:[#allocation5] sm:$0x3] %vm423, %v422
          %v425 = vld [vmem:[#allocation6] sm:$0x3]
          %v426 = vsel %vm421, 1, 0
          %427 = vset.pattern.permute.xlu0 0
          %428 = vperm.xlu0 %427, %v426
          %v429 = vpop.permute.xlu0 %428
          %vm430 = vcmp.eq.s32.totalorder %v429, 1
          %v433 = vsel %vm325, %v315, %v314
          %v435 = vsel %vm430, %v433, %v425
          %436 = vst.msk [vmem:[#allocation6] sm:$0x3] %vm328, %v435
        $region56: #{dtp_forward.1} parent=39 // pred_fallthru
          _
        %437 = vst.msk [vmem:[#allocation2] sm:$0xff] %vm286, %v282
        %438 = vst.msk [vmem:[#allocation2 + $0x8] sm:$0xff] %vm286, %v283
        %v441 = vlaneseq
        %v442 = vand.u32 %v441, 127
        %v443 = vperm.slane %v289, %v442
        %v444 = vperm.slane %v292, %v442
        %v445 = vsel %vm325, %v444, %v443
        %vm447 = vcmask 58368
        %448 = vst.msk [vmem:[#allocation3] sm:$0x3] %vm447, %v445
        %p449 = scmp.eq.s32.totalorder %s25, 9
        // Predicated region
        $region57: #{dtp_forward.1} parent=39 // pred_check
          %p450 = pneg %p449
        $region58: #{dtp_forward.1} parent=39 // pred_check_branch
          %452 = sbr.rel (%p450) target = $region60
        $region59: #{dtp_forward.1} parent=39 // pred_region
          %v453 = vld [vmem:[#allocation4] sm:$0x3]
          %v454 = vmul.f32 %v453, 0.11111111
          %v455 = vsel %vm447, %v454, inf
          %456 = vmin.xlane.f32.xlu0 %v455
          %v457 = vpop.xlane.xlu0 %456
          %v458 = vrot.slane %v457, 4
          %v459 = vmin.f32 %v457, %v458
          %v460 = vrot.slane %v459, 2
          %v461 = vmin.f32 %v459, %v460
          %v462 = vrot.slane %v461, 1
          %v463 = vmin.f32 %v461, %v462
          %s464 = vtos %v463
          %v465 = vsel %vm447, %v454, -inf
          %466 = vmax.xlane.f32.xlu0 %v465
          %v467 = vpop.xlane.xlu0 %466
          %v468 = vrot.slane %v467, 4
          %v469 = vmax.f32 %v467, %v468
          %v470 = vrot.slane %v469, 2
          %v471 = vmax.f32 %v469, %v470
          %v472 = vrot.slane %v471, 1
          %v473 = vmax.f32 %v471, %v472
          %s474 = vtos %v473
          %s475 = ssub.f32 %s474, %s464
          %s476 = smax.f32 %s475, 1e-12
          %v477 = vstv %s476
          %v478 = vrcp.pop %v477
          %v479 = vmul.f32 %v477, %v478
          %v480 = vsub.f32 1.0, %v479
          %v481 = vmul.f32 %v478, %v480
          %v482 = vadd.f32 %v478, %v481
          %vm483 = vweird.f32 %v477
          %vm484 = vweird.f32 %v478
          %vm485 = vmor %vm483, %vm484
          %v486 = vsel %vm485, %v478, %v482
          %v487 = vand.u32 2147483647, %v477
          %vm488 = vcmp.eq.f32.partialorder %v487, 8.507059e+37
          %v489 = vand.u32 %v477, 2147483648
          %v490 = vor.u32 1.1754944e-38, %v489
          %v491 = vsel %vm488, %v490, %v486
          %s492 = vtos %v491
          %s493 = smul.f32 %s475, %s492
          %p494 = scmp.gt.f32.partialorder %s493, 0.9
          %s495 = scalar_select %p494, 1, 0
          %s496 = scvt.s32.f32 %s495
          %v497 = vstv %s496
          %vm498 = vcmask 0
          %499 = vst.msk [vmem:[#allocation13] sm:$0x1] %vm498, %v497
          %v500 = vld [vmem:[#allocation6] sm:$0x3]
          %v501 = vld [vmem:[#allocation11] sm:$0xff]
          %v502 = vld [vmem:[#allocation11 + $0x8] sm:$0xff]
          %v503 = vld [vmem:[#allocation11 + $0x10] sm:$0xff]
          %v504 = vld [vmem:[#allocation11 + $0x18] sm:$0xff]
          %v505 = vld [vmem:[%s4] sm:$0x1]
          %v507 = vperm.slane %v505, 0
          %v510 = vsel %vm286, %v500, 0
          %512 = vmatpush.msra.mxu0 0.0
          %513 = vmatpush.msra.mxu0 0.0
          %514 = vmatpush.msra.mxu0 0.0
          %515 = vmatpush.msra.mxu0 0.0
          %516 = vmatpush.msra.mxu0 0.0
          %517 = vmatpush.msra.mxu0 0.0
          %518 = vmatpush.msra.mxu0 0.0
          %519 = vmatpush.msra.mxu0 0.0
          %520 = vmatpush.msra.mxu0 0.0
          %521 = vmatpush.msra.mxu0 0.0
          %522 = vmatpush.msra.mxu0 0.0
          %523 = vmatpush.msra.mxu0 0.0
          %524 = vmatpush.msra.mxu0 %v504
          %525 = vmatpush.msra.mxu0 %v503
          %526 = vmatpush.msra.mxu0 %v502
          %527 = vmatpush.msra.mxu0 %v501
          %528 = vmatmul.f32.gmra.mxu0 %v510
          %v529 = vpop.f32.mrf.mxu0
          %v530 = vadd.f32 %v507, %v529
          %531 = vdwg.mxu0
          %v532 = vmul.f32 %v530, %v497
          %533 = vst.msk [vmem:[%s6] sm:$0x3] %vm328, %v532
        $region60: #{dtp_forward.1} parent=39 // pred_fallthru
          _
        // Predicated region
        $region61: #{dtp_forward.1} parent=39 // pred_check
          %p534 = pneg %p150
        $region62: #{dtp_forward.1} parent=39 // pred_check_branch
          %536 = sbr.rel (%p534) target = $region64
        $region63: #{dtp_forward.1} parent=39 // pred_region
          %538 = vsyncadd [#allocation10], 0
          %s540 = sshll.u32 [#allocation13], 4
          %s541 = int_to_ptr.vmem [resolvable:$true] %s540
          %s542 = sshll.u32 %s5, 4
          %s543 = int_to_ptr.hbm [resolvable:$true] %s542
          %545 = dma.vmem_to_hbm [thread:$0]  %s541, 16, %s543, [#allocation10]
        $region64: #{dtp_forward.1} parent=39 // pred_fallthru
          _
        // Predicated region
        $region65: #{dtp_forward.1} parent=39 // pred_check
          %p546 = pneg %p171
        $region66: #{dtp_forward.1} parent=39 // pred_check_branch
          %548 = sbr.rel (%p546) target = $region68
        $region67: #{dtp_forward.1} parent=39 // pred_region
          _
        $region68: #{dtp_forward.1} parent=39 // pred_fallthru
          _
        // Predicated region
        $region69: #{dtp_forward.1} parent=39 // pred_check
          %p549 = pneg %p150
        $region70: #{dtp_forward.1} parent=39 // pred_check_branch
          %551 = sbr.rel (%p549) target = $region72
        $region71: #{dtp_forward.1} parent=39 // pred_region
          %553 = dma.done [#allocation10], 16
        $region72: #{dtp_forward.1} parent=39 // pred_fallthru
          _
        // Predicated region
        $region73: #{dtp_forward.1} parent=39 // pred_check
          %p554 = pneg %p171
        $region74: #{dtp_forward.1} parent=39 // pred_check_branch
          %556 = sbr.rel (%p554) target = $region76
        $region75: #{dtp_forward.1} parent=39 // pred_region
          _
        $region76: #{dtp_forward.1} parent=39 // pred_fallthru
          _
      $region40: #{dtp_forward.1} parent=5 // pred_fallthru
        _
      %p557 = scmp.le.s32.totalorder 2, %s20
      // Predicated region
      $region77: #{dtp_forward.1} parent=5 // pred_check
        %p558 = pneg %p557
      $region78: #{dtp_forward.1} parent=5 // pred_check_branch
        %560 = sbr.rel (%p558) target = $region80
      $region79: #{dtp_forward.1} parent=5 // pred_region
        %s561 = ssub.s32 %s20, 2
      $region80: #{dtp_forward.1} parent=5 // pred_fallthru
        _
    $region6: #{dtp_forward.1} parent=1 // loop_footer
      %s24 = sadd.s32 1, %s20
    $region7: #{dtp_forward.1} parent=1 // loop_footer_branch
      %19 = sbr.rel target = $region3
    $region8: #{dtp_forward.1} parent=1 // loop_exit
      _
    %562 = vsyncpa [#allocation9], 1
    %s563 = scalar_lea.sflag [#allocation9], 1
    %564 = vsyncpa %s563, 1
    %565 = vsyncpa [#allocation12], 1
    %566 = vsyncpa [#allocation10], 1
    %s567 = scalar_lea.sflag [#allocation10], 1
    %568 = vsyncpa %s567, 1

</llo_original>
